<compile_context>
chip_gen: v6e
topology: v6e:2x2x1
jax: 0.10.0
libtpu: 0.0.40
codegen_flags: <defaults>
</compile_context>

<pallas_src>
import jax
import jax.numpy as jnp
from jax.experimental import pallas as pl
from jax.experimental.pallas import tpu as pltpu

INPUT_SIZE = 128
HIDDEN_SIZE = 20
NUM_CLASSES = 2
TB_MAX = 4096  # rows per batch tile (multiple of 8); 4 MiB double-buffered x


def _round_up(n, m):
    return ((n + m - 1) // m) * m


def mlp_kernel(x_ref, w1_ref, b1_ref, w2_ref, b2_ref, o_ref):
    # First linear layer + tanh (MXU matmul, f32 accumulation).
    h = jnp.dot(x_ref[...], w1_ref[...], preferred_element_type=jnp.float32)
    h = jnp.tanh(h + b1_ref[...])            # (TB, H) + (1, H) broadcast

    # Second linear layer (tiny; fused, both operands vreg-resident).
    logits = jnp.dot(h, w2_ref[...], preferred_element_type=jnp.float32)
    logits = logits + b2_ref[...]            # (TB, C) + (1, C) broadcast

    # 2-class softmax via the symmetric tanh form (exact, single EUP op/row):
    #   p0 = sigmoid(l0 - l1) = 0.5 * (1 + tanh((l0 - l1) / 2))
    #   p1 = sigmoid(l1 - l0) = 0.5 * (1 - tanh((l0 - l1) / 2))
    t = jnp.tanh(0.5 * (logits[:, 0:1] - logits[:, 1:2]))   # (TB, 1)
    p0 = 0.5 * (1.0 + t)
    p1 = 0.5 * (1.0 - t)
    o_ref[...] = jnp.concatenate([p0, p1], axis=-1).astype(o_ref.dtype)


def net_forward(x, w1, b1, w2, b2, *, tb_max=TB_MAX):
    """x: (B, INPUT_SIZE) f32. Returns softmax probabilities (B, NUM_CLASSES) f32."""
    B = x.shape[0]

    # Pad only to the f32 sublane multiple (8); ragged last grid block handles
    # the rest (masked OOB stores; out[:B] discards padded/garbage rows).
    b_pad = _round_up(max(B, 1), 8)
    if b_pad != B:
        x = jnp.pad(x, ((0, b_pad - B), (0, 0)))

    # Tile rows: as large as possible (amortize ~0.35 us/step overhead), but
    # split into >= 2 balanced tiles when the batch allows so v7x's two
    # TensorCores both get work; capped at TB_MAX for VMEM headroom.
    tb = min(tb_max, _round_up(pl.cdiv(b_pad, 2), 8))
    tb = max(tb, 8)
    grid = (pl.cdiv(b_pad, tb),)

    # Biases as (1, N) rows so they live as 2-D VMEM tiles and broadcast cleanly.
    b1_2d = b1.reshape(1, HIDDEN_SIZE)
    b2_2d = b2.reshape(1, NUM_CLASSES)

    weight_bytes = 4 * (INPUT_SIZE * HIDDEN_SIZE + HIDDEN_SIZE
                        + HIDDEN_SIZE * NUM_CLASSES + NUM_CLASSES)
    cost = pl.CostEstimate(
        flops=2 * b_pad * (INPUT_SIZE * HIDDEN_SIZE + HIDDEN_SIZE * NUM_CLASSES),
        transcendentals=b_pad * (HIDDEN_SIZE + 1),   # tanh per hidden + 1 tanh per row
        bytes_accessed=4 * b_pad * (INPUT_SIZE + NUM_CLASSES) + weight_bytes,
    )

    out = pl.pallas_call(
        mlp_kernel,
        out_shape=jax.ShapeDtypeStruct((b_pad, NUM_CLASSES), jnp.float32),
        grid_spec=pltpu.PrefetchScalarGridSpec(
            num_scalar_prefetch=0,
            grid=grid,
            in_specs=[
                pl.BlockSpec((tb, INPUT_SIZE), lambda i: (i, 0)),
                pl.BlockSpec((INPUT_SIZE, HIDDEN_SIZE), lambda i: (0, 0)),
                pl.BlockSpec((1, HIDDEN_SIZE), lambda i: (0, 0)),
                pl.BlockSpec((HIDDEN_SIZE, NUM_CLASSES), lambda i: (0, 0)),
                pl.BlockSpec((1, NUM_CLASSES), lambda i: (0, 0)),
            ],
            out_specs=pl.BlockSpec((tb, NUM_CLASSES), lambda i: (i, 0)),
        ),
        compiler_params=pltpu.CompilerParams(
            # Batch axis is embarrassingly parallel (megacore sharding on v7x;
            # harmless no-op on single-TC v5e/v6e).
            dimension_semantics=("parallel",),
            # Explicit headroom: > v5e's 16 MiB default, < v7x's 64 MiB physical.
            vmem_limit_bytes=48 * 1024 * 1024,
        ),
        cost_estimate=cost,
    )(x, w1, b1_2d, w2, b2_2d)

    return out[:B]


def init_params(key):
    """Deterministic init mimicking nn.Linear default (U[-1/sqrt(fan_in), 1/sqrt(fan_in)]).

    Weights are stored as (in_features, out_features) — transposed vs. PyTorch's
    (out_features, in_features) — so the kernel does x @ W directly.
    """
    k1, k2, k3, k4 = jax.random.split(key, 4)
    bound1 = 1.0 / jnp.sqrt(float(INPUT_SIZE))
    bound2 = 1.0 / jnp.sqrt(float(HIDDEN_SIZE))
    w1 = jax.random.uniform(k1, (INPUT_SIZE, HIDDEN_SIZE), jnp.float32,
                            minval=-bound1, maxval=bound1)
    b1 = jax.random.uniform(k2, (HIDDEN_SIZE,), jnp.float32,
                            minval=-bound1, maxval=bound1)
    w2 = jax.random.uniform(k3, (HIDDEN_SIZE, NUM_CLASSES), jnp.float32,
                            minval=-bound2, maxval=bound2)
    b2 = jax.random.uniform(k4, (NUM_CLASSES,), jnp.float32,
                            minval=-bound2, maxval=bound2)
    return w1, b1, w2, b2


def reference_forward(x, w1, b1, w2, b2):
    h = jnp.tanh(x @ w1 + b1)
    logits = h @ w2 + b2
    return jax.nn.softmax(logits, axis=-1)


if __name__ == "__main__":
    key = jax.random.PRNGKey(0)
    kx, kp, kx2 = jax.random.split(key, 3)

    w1, b1, w2, b2 = init_params(kp)

    # Small batch (single tile).
    B = 8
    x = jax.random.normal(kx, (B, INPUT_SIZE), jnp.float32)
    out = jax.block_until_ready(net_forward(x, w1, b1, w2, b2))
    ref = reference_forward(x, w1, b1, w2, b2)
    assert out.shape == (B, NUM_CLASSES)
    assert jnp.allclose(out, ref, atol=1e-5, rtol=1e-5), "mismatch vs JAX reference (B=8)"
    assert jnp.allclose(jnp.sum(out, axis=-1), 1.0, atol=1e-5), "softmax rows must sum to 1"

    # Larger, non-multiple-of-8 batch: exercises multi-tile grid (2 tiles for
    # v7x core balance) and the ragged last block (masked OOB stores).
    B2 = 2052
    x2 = jax.random.normal(kx2, (B2, INPUT_SIZE), jnp.float32)
    out2 = jax.block_until_ready(net_forward(x2, w1, b1, w2, b2))
    ref2 = reference_forward(x2, w1, b1, w2, b2)
    assert out2.shape == (B2, NUM_CLASSES)
    assert jnp.allclose(out2, ref2, atol=1e-5, rtol=1e-5), "mismatch vs JAX reference (B=2052)"
    assert jnp.allclose(jnp.sum(out2, axis=-1), 1.0, atol=1e-5), "softmax rows must sum to 1"

    print("KERNEL_OK")
</pallas_src>

<mosaic_0001>
module attributes {stable_mosaic.version = 11 : i64} {
  func.func @mlp_kernel(%arg0: i32, %arg1: memref<8x128xf32, #tpu.memory_space<vmem>>, %arg2: memref<128x20xf32, #tpu.memory_space<vmem>>, %arg3: memref<1x20xf32, #tpu.memory_space<vmem>>, %arg4: memref<20x2xf32, #tpu.memory_space<vmem>>, %arg5: memref<1x2xf32, #tpu.memory_space<vmem>>, %arg6: memref<8x2xf32, #tpu.memory_space<vmem>>) attributes {dimension_semantics = [#tpu.dimension_semantics<parallel>], iteration_bounds = array<i64: 1>, scalar_prefetch = 0 : i64, scratch_operands = 0 : i64, tpu.core_type = #tpu.core_type<tc>, window_params = [{transform_indices = @transform_0, window_bounds = array<i64: 8, 128>}, {pipeline_mode = #tpu.pipeline_mode<synchronous>, transform_indices = @transform_1, window_bounds = array<i64: 128, 20>}, {pipeline_mode = #tpu.pipeline_mode<synchronous>, transform_indices = @transform_2, window_bounds = array<i64: 1, 20>}, {pipeline_mode = #tpu.pipeline_mode<synchronous>, transform_indices = @transform_3, window_bounds = array<i64: 20, 2>}, {pipeline_mode = #tpu.pipeline_mode<synchronous>, transform_indices = @transform_4, window_bounds = array<i64: 1, 2>}, {transform_indices = @transform_5, window_bounds = array<i64: 8, 2>}]} {
    %c0 = arith.constant 0 : index
    %c0_0 = arith.constant 0 : index
    %0 = vector.load %arg1[%c0, %c0_0] : memref<8x128xf32, #tpu.memory_space<vmem>>, vector<8x128xf32>
    %c0_1 = arith.constant 0 : index
    %c0_2 = arith.constant 0 : index
    %1 = vector.load %arg2[%c0_1, %c0_2] : memref<128x20xf32, #tpu.memory_space<vmem>>, vector<128x20xf32>
    %cst = arith.constant dense<0.000000e+00> : vector<8x20xf32>
    %2 = tpu.matmul %0, %1, %cst {dimension_numbers = #tpu.dot_dimension_numbers<[1], [0], [0], [1], [0, 0, 1, 1], [], []>} : vector<8x128xf32>, vector<128x20xf32>, vector<8x20xf32> -> vector<8x20xf32>
    %c0_3 = arith.constant 0 : index
    %c0_4 = arith.constant 0 : index
    %3 = vector.load %arg3[%c0_3, %c0_4] : memref<1x20xf32, #tpu.memory_space<vmem>>, vector<1x20xf32>
    %4 = vector.broadcast %3 : vector<1x20xf32> to vector<8x20xf32>
    %5 = arith.addf %2, %4 : vector<8x20xf32>
    %6 = math.tanh %5 : vector<8x20xf32>
    %c0_5 = arith.constant 0 : index
    %c0_6 = arith.constant 0 : index
    %7 = vector.load %arg4[%c0_5, %c0_6] : memref<20x2xf32, #tpu.memory_space<vmem>>, vector<20x2xf32>
    %cst_7 = arith.constant dense<0.000000e+00> : vector<8x2xf32>
    %8 = tpu.matmul %6, %7, %cst_7 {dimension_numbers = #tpu.dot_dimension_numbers<[1], [0], [0], [1], [0, 0, 1, 1], [], []>} : vector<8x20xf32>, vector<20x2xf32>, vector<8x2xf32> -> vector<8x2xf32>
    %c0_8 = arith.constant 0 : index
    %c0_9 = arith.constant 0 : index
    %9 = vector.load %arg5[%c0_8, %c0_9] : memref<1x2xf32, #tpu.memory_space<vmem>>, vector<1x2xf32>
    %10 = vector.broadcast %9 : vector<1x2xf32> to vector<8x2xf32>
    %11 = arith.addf %8, %10 : vector<8x2xf32>
    %12 = vector.extract_strided_slice %11 {offsets = [0, 0], sizes = [8, 1], strides = [1, 1]} : vector<8x2xf32> to vector<8x1xf32>
    %13 = vector.extract_strided_slice %11 {offsets = [0, 1], sizes = [8, 1], strides = [1, 1]} : vector<8x2xf32> to vector<8x1xf32>
    %14 = arith.subf %12, %13 : vector<8x1xf32>
    %cst_10 = arith.constant 5.000000e-01 : f32
    %15 = vector.broadcast %cst_10 : f32 to vector<8x1xf32>
    %16 = arith.mulf %15, %14 : vector<8x1xf32>
    %17 = math.tanh %16 : vector<8x1xf32>
    %cst_11 = arith.constant 1.000000e+00 : f32
    %18 = vector.broadcast %cst_11 : f32 to vector<8x1xf32>
    %19 = arith.addf %18, %17 : vector<8x1xf32>
    %cst_12 = arith.constant 5.000000e-01 : f32
    %20 = vector.broadcast %cst_12 : f32 to vector<8x1xf32>
    %21 = arith.mulf %20, %19 : vector<8x1xf32>
    %cst_13 = arith.constant 1.000000e+00 : f32
    %22 = vector.broadcast %cst_13 : f32 to vector<8x1xf32>
    %23 = arith.subf %22, %17 : vector<8x1xf32>
    %cst_14 = arith.constant 5.000000e-01 : f32
    %24 = vector.broadcast %cst_14 : f32 to vector<8x1xf32>
    %25 = arith.mulf %24, %23 : vector<8x1xf32>
    %26 = tpu.concatenate %21, %25 in 1 : vector<8x1xf32>, vector<8x1xf32> -> vector<8x2xf32>
    %c0_15 = arith.constant 0 : index
    %c0_16 = arith.constant 0 : index
    %27 = vector.load %arg6[%c0_15, %c0_16] : memref<8x2xf32, #tpu.memory_space<vmem>>, vector<8x2xf32>
    tpu.vector_store %arg6[%c0_15, %c0_16], %26 {strides = array<i32>} : memref<8x2xf32, #tpu.memory_space<vmem>>, vector<8x2xf32>,
    return
  }
  func.func @transform_0(%arg0: i32) -> (i32, i32) {
    %c0_i32 = arith.constant 0 : i32
    %c0_i32_0 = arith.constant 0 : i32
    return %arg0, %c0_i32 : i32, i32
  }
  func.func @transform_1(%arg0: i32) -> (i32, i32) {
    %c0_i32 = arith.constant 0 : i32
    %c0_i32_0 = arith.constant 0 : i32
    %c0_i32_1 = arith.constant 0 : i32
    return %c0_i32, %c0_i32_0 : i32, i32
  }
  func.func @transform_2(%arg0: i32) -> (i32, i32) {
    %c0_i32 = arith.constant 0 : i32
    %c0_i32_0 = arith.constant 0 : i32
    %c0_i32_1 = arith.constant 0 : i32
    return %c0_i32, %c0_i32_0 : i32, i32
  }
  func.func @transform_3(%arg0: i32) -> (i32, i32) {
    %c0_i32 = arith.constant 0 : i32
    %c0_i32_0 = arith.constant 0 : i32
    %c0_i32_1 = arith.constant 0 : i32
    return %c0_i32, %c0_i32_0 : i32, i32
  }
  func.func @transform_4(%arg0: i32) -> (i32, i32) {
    %c0_i32 = arith.constant 0 : i32
    %c0_i32_0 = arith.constant 0 : i32
    %c0_i32_1 = arith.constant 0 : i32
    return %c0_i32, %c0_i32_0 : i32, i32
  }
  func.func @transform_5(%arg0: i32) -> (i32, i32) {
    %c0_i32 = arith.constant 0 : i32
    %c0_i32_0 = arith.constant 0 : i32
    return %arg0, %c0_i32 : i32, i32
  }
}

</mosaic_0001>

<llo_original>
// kernel: tpu_custom_call.1
$region0: #{tpu_custom_call.1}
  #allocation0 [shape = 'u32[]', space=smem, size = 0x4, offset = 0x4, fixed_abs, tag = 'smem constant byte address 0x4 - core index']
  #allocation1 [shape = 'u32[144,128]{1,0:T(1,128)}', space=vmem, size = 0x12000, scoped, tag = 'internal scratch']
  %s0 = inlined_call_operand.vmem [shape: f32[8,128], index: 0, kind: input, shape index: {}]
  %s1 = inlined_call_operand.vmem [shape: f32[128,20], index: 1, kind: input, shape index: {}]
  %s2 = inlined_call_operand.vmem [shape: f32[1,20], index: 2, kind: input, shape index: {}]
  %s3 = inlined_call_operand.vmem [shape: f32[20,2], index: 3, kind: input, shape index: {}]
  %s4 = inlined_call_operand.vmem [shape: f32[1,2], index: 4, kind: input, shape index: {}]
  %s5 = inlined_call_operand.vmem [shape: f32[8,2], index: 5, kind: output, shape index: {}]
  %s6 = sld [smem:[#allocation0]]
  $region30: #{tpu_custom_call.1} parent=0
    _
  %s8 = ssub.s32 1, %s6
  %s9 = scalar_select 0, %s8, %s6
  // Predicated region
  $region2: #{tpu_custom_call.1} parent=0 // pred_check
    _
  $region3: #{tpu_custom_call.1} parent=0 // pred_check_branch
    %11 = sbr.rel (0) target = $region5
  $region4: #{tpu_custom_call.1} parent=0 // pred_region
    _
  $region5: #{tpu_custom_call.1} parent=0 // pred_fallthru
    _
  // Predicated region
  $region6: #{tpu_custom_call.1} parent=0 // pred_check
    _
  $region7: #{tpu_custom_call.1} parent=0 // pred_check_branch
    %13 = sbr.rel (0) target = $region9
  $region8: #{tpu_custom_call.1} parent=0 // pred_region
    _
  $region9: #{tpu_custom_call.1} parent=0 // pred_fallthru
    _
  // Predicated region
  $region10: #{tpu_custom_call.1} parent=0 // pred_check
    _
  $region11: #{tpu_custom_call.1} parent=0 // pred_check_branch
    %15 = sbr.rel (0) target = $region13
  $region12: #{tpu_custom_call.1} parent=0 // pred_region
    _
  $region13: #{tpu_custom_call.1} parent=0 // pred_fallthru
    _
  // Predicated region
  $region14: #{tpu_custom_call.1} parent=0 // pred_check
    _
  $region15: #{tpu_custom_call.1} parent=0 // pred_check_branch
    %17 = sbr.rel (0) target = $region17
  $region16: #{tpu_custom_call.1} parent=0 // pred_region
    _
  $region17: #{tpu_custom_call.1} parent=0 // pred_fallthru
    _
  // Predicated region
  $region18: #{tpu_custom_call.1} parent=0 // pred_check
    _
  $region19: #{tpu_custom_call.1} parent=0 // pred_check_branch
    %19 = sbr.rel (0) target = $region21
  $region20: #{tpu_custom_call.1} parent=0 // pred_region
    _
  $region21: #{tpu_custom_call.1} parent=0 // pred_fallthru
    _
  %v20 = vld [vmem:[%s0] sm:$0xff]
  %v21 = vld [vmem:[%s1] sm:$0xff]
  %v22 = vld [vmem:[%s1 + $0x8] sm:$0xff]
  %v23 = vld [vmem:[%s1 + $0x10] sm:$0xff]
  %v24 = vld [vmem:[%s1 + $0x18] sm:$0xff]
  %v25 = vld [vmem:[%s1 + $0x20] sm:$0xff]
  %v26 = vld [vmem:[%s1 + $0x28] sm:$0xff]
  %v27 = vld [vmem:[%s1 + $0x30] sm:$0xff]
  %v28 = vld [vmem:[%s1 + $0x38] sm:$0xff]
  %v29 = vld [vmem:[%s1 + $0x40] sm:$0xff]
  %v30 = vld [vmem:[%s1 + $0x48] sm:$0xff]
  %v31 = vld [vmem:[%s1 + $0x50] sm:$0xff]
  %v32 = vld [vmem:[%s1 + $0x58] sm:$0xff]
  %v33 = vld [vmem:[%s1 + $0x60] sm:$0xff]
  %v34 = vld [vmem:[%s1 + $0x68] sm:$0xff]
  %v35 = vld [vmem:[%s1 + $0x70] sm:$0xff]
  %v36 = vld [vmem:[%s1 + $0x78] sm:$0xff]
  %v37 = vld [vmem:[%s2] sm:$0x1]
  %v39 = vlaneseq
  %v40 = vshrl.u32 %v39, 7
  %v41 = vsub.s32 0, %v40
  %v42 = vrot.slane %v37, %v41
  %44 = vmatprep.subr.mxu0 0.0
  %45 = vmatpush1.msra.mxu0 %v36
  %46 = vmatprep.subr.mxu0 0.0
  %47 = vmatpush1.msra.mxu0 %v35
  %48 = vmatprep.subr.mxu0 0.0
  %49 = vmatpush1.msra.mxu0 %v34
  %50 = vmatprep.subr.mxu0 0.0
  %51 = vmatpush1.msra.mxu0 %v33
  %52 = vmatprep.subr.mxu0 0.0
  %53 = vmatpush1.msra.mxu0 %v32
  %54 = vmatprep.subr.mxu0 0.0
  %55 = vmatpush1.msra.mxu0 %v31
  %56 = vmatprep.subr.mxu0 0.0
  %57 = vmatpush1.msra.mxu0 %v30
  %58 = vmatprep.subr.mxu0 0.0
  %59 = vmatpush1.msra.mxu0 %v29
  %60 = vmatprep.subr.mxu0 0.0
  %61 = vmatpush1.msra.mxu0 %v28
  %62 = vmatprep.subr.mxu0 0.0
  %63 = vmatpush1.msra.mxu0 %v27
  %64 = vmatprep.subr.mxu0 0.0
  %65 = vmatpush1.msra.mxu0 %v26
  %66 = vmatprep.subr.mxu0 0.0
  %67 = vmatpush1.msra.mxu0 %v25
  %68 = vmatprep.subr.mxu0 0.0
  %69 = vmatpush1.msra.mxu0 %v24
  %70 = vmatprep.subr.mxu0 0.0
  %71 = vmatpush1.msra.mxu0 %v23
  %72 = vmatprep.subr.mxu0 0.0
  %73 = vmatpush1.msra.mxu0 %v22
  %74 = vmatprep.subr.mxu0 0.0
  %75 = vmatpush1.msra.mxu0 %v21
  %76 = vmatprep.subr.mxu0 0.0
  %77 = vmatpush2.msra.mxu0 0.0
  %78 = vmatprep.subr.mxu0 0.0
  %79 = vmatpush2.msra.mxu0 0.0
  %80 = vmatprep.subr.mxu0 0.0
  %81 = vmatpush2.msra.mxu0 0.0
  %82 = vmatprep.subr.mxu0 0.0
  %83 = vmatpush2.msra.mxu0 0.0
  %84 = vmatprep.subr.mxu0 0.0
  %85 = vmatpush2.msra.mxu0 0.0
  %86 = vmatprep.subr.mxu0 0.0
  %87 = vmatpush2.msra.mxu0 0.0
  %88 = vmatprep.subr.mxu0 0.0
  %89 = vmatpush2.msra.mxu0 0.0
  %90 = vmatprep.subr.mxu0 0.0
  %91 = vmatpush2.msra.mxu0 0.0
  %92 = vmatprep.subr.mxu0 0.0
  %93 = vmatpush2.msra.mxu0 0.0
  %94 = vmatprep.subr.mxu0 0.0
  %95 = vmatpush2.msra.mxu0 0.0
  %96 = vmatprep.subr.mxu0 0.0
  %97 = vmatpush2.msra.mxu0 0.0
  %98 = vmatprep.subr.mxu0 0.0
  %99 = vmatpush2.msra.mxu0 0.0
  %100 = vmatprep.subr.mxu0 0.0
  %101 = vmatpush2.msra.mxu0 0.0
  %102 = vmatprep.subr.mxu0 0.0
  %103 = vmatpush2.msra.mxu0 0.0
  %104 = vmatprep.subr.mxu0 0.0
  %105 = vmatpush2.msra.mxu0 0.0
  %106 = vmatprep.subr.mxu0 0.0
  %107 = vmatpush2.msra.mxu0 0.0
  %108 = vmatprep.mubr.f32.mxu0 0.0
  %109 = vmatmul.mubr.f32.gmra.mxu0 %v20
  %v110 = vpop.f32.mrf.mxu0
  %v111 = vadd.f32 %v42, %v110
  %v112 = vpop.f32.mrf.mxu0
  %113 = vdwg.mxu0
  %v114 = vtanh.pop %v111
  %v115 = vld [vmem:[%s3] sm:$0xff]
  %v116 = vld [vmem:[%s3 + $0x8] sm:$0xff]
  %v117 = vld [vmem:[%s3 + $0x10] sm:$0xf]
  %v118 = vld [vmem:[%s4] sm:$0x1]
  %v120 = vlaneseq
  %v121 = vshrl.u32 %v120, 7
  %v122 = vsub.s32 0, %v121
  %v123 = vrot.slane %v118, %v122
  %vm125 = vcmask 162816
  %v127 = vsel %vm125, %v114, 0
  %vm129 = vcmask 1043456
  %v131 = vsel %vm129, %v117, 0
  %133 = vmatprep.subr.mxu0 0.0
  %134 = vmatpush1.msra.mxu0 0.0
  %135 = vmatprep.subr.mxu0 0.0
  %136 = vmatpush1.msra.mxu0 0.0
  %137 = vmatprep.subr.mxu0 0.0
  %138 = vmatpush1.msra.mxu0 0.0
  %139 = vmatprep.subr.mxu0 0.0
  %140 = vmatpush1.msra.mxu0 0.0
  %141 = vmatprep.subr.mxu0 0.0
  %142 = vmatpush1.msra.mxu0 0.0
  %143 = vmatprep.subr.mxu0 0.0
  %144 = vmatpush1.msra.mxu0 0.0
  %145 = vmatprep.subr.mxu0 0.0
  %146 = vmatpush1.msra.mxu0 0.0
  %147 = vmatprep.subr.mxu0 0.0
  %148 = vmatpush1.msra.mxu0 0.0
  %149 = vmatprep.subr.mxu0 0.0
  %150 = vmatpush1.msra.mxu0 0.0
  %151 = vmatprep.subr.mxu0 0.0
  %152 = vmatpush1.msra.mxu0 0.0
  %153 = vmatprep.subr.mxu0 0.0
  %154 = vmatpush1.msra.mxu0 0.0
  %155 = vmatprep.subr.mxu0 0.0
  %156 = vmatpush1.msra.mxu0 0.0
  %157 = vmatprep.subr.mxu0 0.0
  %158 = vmatpush1.msra.mxu0 0.0
  %159 = vmatprep.subr.mxu0 0.0
  %160 = vmatpush1.msra.mxu0 %v131
  %161 = vmatprep.subr.mxu0 0.0
  %162 = vmatpush1.msra.mxu0 %v116
  %163 = vmatprep.subr.mxu0 0.0
  %164 = vmatpush1.msra.mxu0 %v115
  %165 = vmatprep.subr.mxu0 0.0
  %166 = vmatpush2.msra.mxu0 0.0
  %167 = vmatprep.subr.mxu0 0.0
  %168 = vmatpush2.msra.mxu0 0.0
  %169 = vmatprep.subr.mxu0 0.0
  %170 = vmatpush2.msra.mxu0 0.0
  %171 = vmatprep.subr.mxu0 0.0
  %172 = vmatpush2.msra.mxu0 0.0
  %173 = vmatprep.subr.mxu0 0.0
  %174 = vmatpush2.msra.mxu0 0.0
  %175 = vmatprep.subr.mxu0 0.0
  %176 = vmatpush2.msra.mxu0 0.0
  %177 = vmatprep.subr.mxu0 0.0
  %178 = vmatpush2.msra.mxu0 0.0
  %179 = vmatprep.subr.mxu0 0.0
  %180 = vmatpush2.msra.mxu0 0.0
  %181 = vmatprep.subr.mxu0 0.0
  %182 = vmatpush2.msra.mxu0 0.0
  %183 = vmatprep.subr.mxu0 0.0
  %184 = vmatpush2.msra.mxu0 0.0
  %185 = vmatprep.subr.mxu0 0.0
  %186 = vmatpush2.msra.mxu0 0.0
  %187 = vmatprep.subr.mxu0 0.0
  %188 = vmatpush2.msra.mxu0 0.0
  %189 = vmatprep.subr.mxu0 0.0
  %190 = vmatpush2.msra.mxu0 0.0
  %191 = vmatprep.subr.mxu0 0.0
  %192 = vmatpush2.msra.mxu0 0.0
  %193 = vmatprep.subr.mxu0 0.0
  %194 = vmatpush2.msra.mxu0 0.0
  %195 = vmatprep.subr.mxu0 0.0
  %196 = vmatpush2.msra.mxu0 0.0
  %197 = vmatprep.mubr.f32.mxu0 0.0
  %198 = vmatmul.mubr.f32.gmra.mxu0 %v127
  %v199 = vpop.f32.mrf.mxu0
  %v200 = vadd.f32 %v123, %v199
  %v201 = vpop.f32.mrf.mxu0
  %202 = vdwg.mxu0
  %204 = vrot.lane.b32.xlu0 %v200, 127
  %v205 = vpop.permute.xlu0 %204
  %v207 = vsub.f32 %v200, %v205
  %v208 = vmul.f32 %v207, 0.5
  %v209 = vtanh.pop %v208
  %v210 = vadd.f32 %v209, 1.0
  %v211 = vmul.f32 %v210, 0.5
  %v212 = vsub.f32 1.0, %v209
  %v213 = vmul.f32 %v212, 0.5
  %215 = vrot.lane.b32.xlu0 %v213, 1
  %v216 = vpop.permute.xlu0 %215
  %vm218 = vcmask 7168
  %v219 = vsel %vm218, %v211, %v216
  %vm220 = vcmask 15360
  %221 = vst.msk [vmem:[%s5] sm:$0xff] %vm220, %v219
  // Predicated region
  $region22: #{tpu_custom_call.1} parent=0 // pred_check
    _
  $region23: #{tpu_custom_call.1} parent=0 // pred_check_branch
    %223 = sbr.rel (0) target = $region25
  $region24: #{tpu_custom_call.1} parent=0 // pred_region
    _
  $region25: #{tpu_custom_call.1} parent=0 // pred_fallthru
    _
  // Predicated region
  $region26: #{tpu_custom_call.1} parent=0 // pred_check
    _
  $region27: #{tpu_custom_call.1} parent=0 // pred_check_branch
    %225 = sbr.rel (0) target = $region29
  $region28: #{tpu_custom_call.1} parent=0 // pred_region
    _
  $region29: #{tpu_custom_call.1} parent=0 // pred_fallthru
    _

</llo_original>
